<compile_context>
chip_gen: v7x
topology: tpu7x:2x2x1
jax: 0.10.0
libtpu: 0.0.40
codegen_flags: <defaults>
</compile_context>

<pallas_src>
import functools

import jax
import jax.numpy as jnp
from jax import lax
from jax.experimental import pallas as pl
from jax.experimental.pallas import tpu as pltpu

BN_EPS = 1e-3  # matches nn.BatchNorm2d(eps=0.001)


# ----------------------------------------------------------------------------
# Fused Pallas kernel: build 2x2 taps in VMEM, one bf16 matmul, +shift, ReLU
# ----------------------------------------------------------------------------
def _upsampler_kernel(x_ref, h_ref, w_ref, s_ref, o_ref, *, TH, W, Cin):
    # x_ref: (1, TH, W+1, Cin) bf16  -- TH rows of the zero-padded NHWC input
    # h_ref: (1, 1,  W+1, Cin) bf16  -- halo row (row TH of this tile)
    # w_ref: (4*Cin, 4*Cout)   bf16  -- folded conv+BN weights
    # s_ref: (1, 4*Cout)       f32   -- folded bias/BN shift
    # o_ref: (1, TH*W, 4*Cout) f32   -- lane-dense output slab
    x = jnp.concatenate([x_ref[0], h_ref[0]], axis=0)        # (TH+1, W+1, Cin)
    M = TH * W
    t00 = x[:TH, :W, :].reshape(M, Cin)                      # x[i  , j  ]
    t01 = x[:TH, 1:, :].reshape(M, Cin)                      # x[i  , j+1]
    t10 = x[1:,  :W, :].reshape(M, Cin)                      # x[i+1, j  ]
    t11 = x[1:,  1:, :].reshape(M, Cin)                      # x[i+1, j+1]
    a = jnp.concatenate([t00, t01, t10, t11], axis=-1)       # (M, 4*Cin) bf16
    acc = jnp.dot(a, w_ref[...], preferred_element_type=jnp.float32)
    # bias + BatchNorm already folded into w/shift; just shift + ReLU (f32)
    o_ref[0] = jnp.maximum(acc + s_ref[...], 0.0)            # (M, 4*Cout)


# ----------------------------------------------------------------------------
# Row-tile selection: divisor of H, lane/sublane friendly, fits a VMEM budget,
# and (when possible) >= 2 tiles so both grid axes pipeline / shard on megacore.
# ----------------------------------------------------------------------------
def _pick_row_tile(H, W, Cin, Cout, budget=8 * 1024 * 1024):
    def tile_bytes(t):
        inp = (t + 1) * (W + 1) * Cin * 2      # bf16 input tile (+halo)
        out = t * W * 4 * Cout * 4             # f32 output tile
        return 2 * (inp + out)                 # Pallas double-buffers operands

    cands = [t for t in range(1, H + 1)
             if H % t == 0 and ((t * W) % 8 == 0 or t == H)]
    good = [t for t in cands if t < H and t * W >= 128 and tile_bytes(t) <= budget]
    if good:
        return max(good)
    fit = [t for t in cands if tile_bytes(t) <= budget]
    return max(fit) if fit else min(cands)


# ----------------------------------------------------------------------------
# Wrapper: NCHW in / NCHW out, weight folding + sub-pixel de-interleave
# ----------------------------------------------------------------------------
def upsampler_block_forward(x_nchw, params):
    """ConvTranspose2d(3x3, s=2, p=1, op=1, bias) + BatchNorm2d(eps=1e-3) + ReLU."""
    w, b = params["w"], params["b"]            # w: (Cin, Cout, 3, 3) (PyTorch layout)
    gamma, beta, mean, var = params["bn"]
    Cin, Cout = w.shape[0], w.shape[1]
    N, C, H, W = x_nchw.shape
    assert C == Cin

    # NCHW -> NHWC (bf16); pad bottom/right by one zero row/col (the only taps that
    # can fall outside the input are x[i+1, .] / x[., j+1] on the last row/col).
    x = jnp.transpose(x_nchw, (0, 2, 3, 1)).astype(jnp.bfloat16)
    xp = jnp.pad(x, ((0, 0), (0, 1), (0, 1), (0, 0)))            # (N, H+1, W+1, Cin)

    # Sub-pixel phase weights.  Output pixel (2i+r, 2j+s), phase p = 2r+s:
    #   p=(0,0): x[i,j]*w[1,1]
    #   p=(0,1): x[i,j]*w[1,2] + x[i,j+1]*w[1,0]
    #   p=(1,0): x[i,j]*w[2,1] + x[i+1,j]*w[0,1]
    #   p=(1,1): x[i,j]*w[2,2] + x[i,j+1]*w[2,0] + x[i+1,j]*w[0,2] + x[i+1,j+1]*w[0,0]
    wk = lambda kh, kw: w[:, :, kh, kw]                          # (Cin, Cout)
    zero = jnp.zeros((Cin, Cout), jnp.float32)
    row00 = jnp.concatenate([wk(1, 1), wk(1, 2), wk(2, 1), wk(2, 2)], axis=1)
    row01 = jnp.concatenate([zero,     wk(1, 0), zero,     wk(2, 0)], axis=1)
    row10 = jnp.concatenate([zero,     zero,     wk(0, 1), wk(0, 2)], axis=1)
    row11 = jnp.concatenate([zero,     zero,     zero,     wk(0, 0)], axis=1)
    w_big = jnp.concatenate([row00, row01, row10, row11], axis=0)  # (4*Cin, 4*Cout)

    # Fold conv bias + inference BN into weights / shift:
    #   y = (conv + b - mean) * scale + beta  ==>  taps @ (w*scale) + shift
    scale = gamma / jnp.sqrt(var + BN_EPS)                       # (Cout,)
    shift = beta + (b - mean) * scale                            # (Cout,)
    w_big = (w_big * jnp.tile(scale, 4)[None, :]).astype(jnp.bfloat16)
    shift_big = jnp.tile(shift, 4).reshape(1, 4 * Cout).astype(jnp.float32)

    TH = _pick_row_tile(H, W, Cin, Cout)
    nT = H // TH

    kern = functools.partial(_upsampler_kernel, TH=TH, W=W, Cin=Cin)
    out = pl.pallas_call(
        kern,
        out_shape=jax.ShapeDtypeStruct((N, H * W, 4 * Cout), jnp.float32),
        grid=(N, nT),
        in_specs=[
            # main row tile: rows [t*TH, t*TH+TH) of the padded input
            pl.BlockSpec((1, TH, W + 1, Cin), lambda n, t: (n, t, 0, 0)),
            # halo row: row (t+1)*TH (block size 1 -> block index == element row)
            pl.BlockSpec((1, 1, W + 1, Cin), lambda n, t: (n, (t + 1) * TH, 0, 0)),
            # folded weights / shift (grid-invariant -> fetched once)
            pl.BlockSpec((4 * Cin, 4 * Cout), lambda n, t: (0, 0)),
            pl.BlockSpec((1, 4 * Cout), lambda n, t: (0, 0)),
        ],
        out_specs=pl.BlockSpec((1, TH * W, 4 * Cout), lambda n, t: (n, t, 0)),
        compiler_params=pltpu.CompilerParams(
            dimension_semantics=("parallel", "parallel")),  # megacore sharding
    )(xp, xp, w_big, shift_big)

    # De-interleave the 4 sub-pixel phases and return NCHW (as PyTorch).
    y = out.reshape(N, H, W, 2, 2, Cout)                 # (n, h, w, r, s, c)
    y = jnp.transpose(y, (0, 5, 1, 3, 2, 4))             # (n, c, h, r, w, s)
    return y.reshape(N, Cout, 2 * H, 2 * W)


# ----------------------------------------------------------------------------
# Deterministic parameter initialization (PyTorch layouts)
# ----------------------------------------------------------------------------
def init_params(key, cin, cout):
    k1, k2, k3, k4, k5, k6 = jax.random.split(key, 6)
    w = jax.random.normal(k1, (cin, cout, 3, 3), jnp.float32) / jnp.sqrt(cin * 9.0)
    b = 0.01 * jax.random.normal(k2, (cout,), jnp.float32)
    gamma = 1.0 + 0.1 * jax.random.normal(k3, (cout,), jnp.float32)
    beta = 0.1 * jax.random.normal(k4, (cout,), jnp.float32)
    mean = 0.1 * jax.random.normal(k5, (cout,), jnp.float32)
    var = 0.5 + jax.random.uniform(k6, (cout,), jnp.float32)
    return dict(w=w, b=b, bn=(gamma, beta, mean, var))


# ----------------------------------------------------------------------------
# Pure-JAX f32 reference (lax.conv with lhs_dilation) for correctness check
# ----------------------------------------------------------------------------
def ref_forward(x_nchw, params):
    w, b = params["w"], params["b"]
    gamma, beta, mean, var = params["bn"]
    x = jnp.transpose(x_nchw, (0, 2, 3, 1)).astype(jnp.float32)    # NHWC
    w_hwio = jnp.transpose(w[:, :, ::-1, ::-1], (2, 3, 0, 1))      # flip, -> HWIO
    y = lax.conv_general_dilated(
        x, w_hwio, window_strides=(1, 1),
        padding=[(1, 2), (1, 2)],                # (k-1-pad, k-1-pad+output_padding)
        lhs_dilation=(2, 2),
        dimension_numbers=("NHWC", "HWIO", "NHWC"))
    y = y + b
    y = (y - mean) / jnp.sqrt(var + BN_EPS) * gamma + beta
    y = jax.nn.relu(y)
    return jnp.transpose(y, (0, 3, 1, 2))


# ----------------------------------------------------------------------------
if __name__ == "__main__":
    key = jax.random.PRNGKey(0)
    kx, kp = jax.random.split(key)

    NIN, NOUT = 128, 64                     # ERFNet decoder's first UpsamplerBlock
    x = jax.random.normal(kx, (2, NIN, 16, 16), jnp.float32)   # NCHW, as nn.Module
    params = init_params(kp, NIN, NOUT)

    fwd = jax.jit(upsampler_block_forward)
    out = jax.block_until_ready(fwd(x, params))
    assert out.shape == (2, NOUT, 32, 32), out.shape

    ref = ref_forward(x, params)
    max_err = float(jnp.max(jnp.abs(out - ref)))
    if not bool(jnp.allclose(out, ref, atol=3e-2, rtol=3e-2)):
        raise AssertionError(f"Pallas/reference mismatch, max abs err = {max_err}")

    print("KERNEL_OK")
</pallas_src>

<mosaic_0001>
module attributes {stable_mosaic.version = 11 : i64} {
  func.func @_upsampler_kernel(%arg0: i32, %arg1: i32, %arg2: memref<1x8x17x128xbf16, #tpu.memory_space<vmem>>, %arg3: memref<1x1x17x128xbf16, #tpu.memory_space<vmem>>, %arg4: memref<512x256xbf16, #tpu.memory_space<vmem>>, %arg5: memref<1x256xf32, #tpu.memory_space<vmem>>, %arg6: memref<1x128x256xf32, #tpu.memory_space<vmem>>) attributes {dimension_semantics = [#tpu.dimension_semantics<parallel>, #tpu.dimension_semantics<parallel>], iteration_bounds = array<i64: 2, 2>, scalar_prefetch = 0 : i64, scratch_operands = 0 : i64, tpu.core_type = #tpu.core_type<tc>, window_params = [{transform_indices = @transform_0, window_bounds = array<i64: 1, 8, 17, 128>}, {transform_indices = @transform_1, window_bounds = array<i64: 1, 1, 17, 128>}, {pipeline_mode = #tpu.pipeline_mode<synchronous>, transform_indices = @transform_2, window_bounds = array<i64: 512, 256>}, {pipeline_mode = #tpu.pipeline_mode<synchronous>, transform_indices = @transform_3, window_bounds = array<i64: 1, 256>}, {transform_indices = @transform_4, window_bounds = array<i64: 1, 128, 256>}]} {
    %c0 = arith.constant 0 : index
    %c0_0 = arith.constant 0 : index
    %c0_1 = arith.constant 0 : index
    %c0_2 = arith.constant 0 : index
    %0 = vector.load %arg2[%c0, %c0_0, %c0_1, %c0_2] : memref<1x8x17x128xbf16, #tpu.memory_space<vmem>>, vector<1x8x17x128xbf16>
    %1 = vector.shape_cast %0 : vector<1x8x17x128xbf16> to vector<8x17x128xbf16>
    %c0_3 = arith.constant 0 : index
    %c0_4 = arith.constant 0 : index
    %c0_5 = arith.constant 0 : index
    %c0_6 = arith.constant 0 : index
    %2 = vector.load %arg3[%c0_3, %c0_4, %c0_5, %c0_6] : memref<1x1x17x128xbf16, #tpu.memory_space<vmem>>, vector<1x1x17x128xbf16>
    %3 = vector.shape_cast %2 : vector<1x1x17x128xbf16> to vector<1x17x128xbf16>
    %4 = tpu.concatenate %1, %3 in 0 : vector<8x17x128xbf16>, vector<1x17x128xbf16> -> vector<9x17x128xbf16>
    %5 = vector.extract_strided_slice %4 {offsets = [0, 0, 0], sizes = [8, 16, 128], strides = [1, 1, 1]} : vector<9x17x128xbf16> to vector<8x16x128xbf16>
    %6 = vector.shape_cast %5 : vector<8x16x128xbf16> to vector<128x128xbf16>
    %7 = vector.extract_strided_slice %4 {offsets = [0, 1, 0], sizes = [8, 16, 128], strides = [1, 1, 1]} : vector<9x17x128xbf16> to vector<8x16x128xbf16>
    %8 = vector.shape_cast %7 : vector<8x16x128xbf16> to vector<128x128xbf16>
    %9 = vector.extract_strided_slice %4 {offsets = [1, 0, 0], sizes = [8, 16, 128], strides = [1, 1, 1]} : vector<9x17x128xbf16> to vector<8x16x128xbf16>
    %10 = vector.shape_cast %9 : vector<8x16x128xbf16> to vector<128x128xbf16>
    %11 = vector.extract_strided_slice %4 {offsets = [1, 1, 0], sizes = [8, 16, 128], strides = [1, 1, 1]} : vector<9x17x128xbf16> to vector<8x16x128xbf16>
    %12 = vector.shape_cast %11 : vector<8x16x128xbf16> to vector<128x128xbf16>
    %13 = tpu.concatenate %6, %8, %10, %12 in 1 : vector<128x128xbf16>, vector<128x128xbf16>, vector<128x128xbf16>, vector<128x128xbf16> -> vector<128x512xbf16>
    %c0_7 = arith.constant 0 : index
    %c0_8 = arith.constant 0 : index
    %14 = vector.load %arg4[%c0_7, %c0_8] : memref<512x256xbf16, #tpu.memory_space<vmem>>, vector<512x256xbf16>
    %cst = arith.constant dense<0.000000e+00> : vector<128x256xf32>
    %15 = tpu.matmul %13, %14, %cst {dimension_numbers = #tpu.dot_dimension_numbers<[1], [0], [0], [1], [0, 0, 1, 1], [], []>} : vector<128x512xbf16>, vector<512x256xbf16>, vector<128x256xf32> -> vector<128x256xf32>
    %c0_9 = arith.constant 0 : index
    %c0_10 = arith.constant 0 : index
    %16 = vector.load %arg5[%c0_9, %c0_10] : memref<1x256xf32, #tpu.memory_space<vmem>>, vector<1x256xf32>
    %17 = vector.broadcast %16 : vector<1x256xf32> to vector<128x256xf32>
    %18 = arith.addf %15, %17 : vector<128x256xf32>
    %cst_11 = arith.constant 0.000000e+00 : f32
    %19 = vector.broadcast %cst_11 : f32 to vector<128x256xf32>
    %20 = arith.maximumf %18, %19 : vector<128x256xf32>
    %c0_12 = arith.constant 0 : index
    %c0_13 = arith.constant 0 : index
    %c0_14 = arith.constant 0 : index
    %21 = vector.load %arg6[%c0_12, %c0_13, %c0_14] : memref<1x128x256xf32, #tpu.memory_space<vmem>>, vector<1x128x256xf32>
    %22 = vector.shape_cast %21 : vector<1x128x256xf32> to vector<128x256xf32>
    %23 = vector.shape_cast %20 : vector<128x256xf32> to vector<1x128x256xf32>
    tpu.vector_store %arg6[%c0_12, %c0_13, %c0_14], %23 {strides = array<i32>} : memref<1x128x256xf32, #tpu.memory_space<vmem>>, vector<1x128x256xf32>,
    return
  }
  func.func @transform_0(%arg0: i32, %arg1: i32) -> (i32, i32, i32, i32) {
    %c0_i32 = arith.constant 0 : i32
    %c0_i32_0 = arith.constant 0 : i32
    %c0_i32_1 = arith.constant 0 : i32
    return %arg0, %arg1, %c0_i32, %c0_i32_0 : i32, i32, i32, i32
  }
  func.func @transform_1(%arg0: i32, %arg1: i32) -> (i32, i32, i32, i32) {
    %c1_i32 = arith.constant 1 : i32
    %0 = arith.addi %arg1, %c1_i32 : i32
    %c8_i32 = arith.constant 8 : i32
    %1 = arith.muli %0, %c8_i32 : i32
    %c0_i32 = arith.constant 0 : i32
    %c0_i32_0 = arith.constant 0 : i32
    %c0_i32_1 = arith.constant 0 : i32
    return %arg0, %1, %c0_i32, %c0_i32_0 : i32, i32, i32, i32
  }
  func.func @transform_2(%arg0: i32, %arg1: i32) -> (i32, i32) {
    %c0_i32 = arith.constant 0 : i32
    %c0_i32_0 = arith.constant 0 : i32
    %c0_i32_1 = arith.constant 0 : i32
    return %c0_i32, %c0_i32_0 : i32, i32
  }
  func.func @transform_3(%arg0: i32, %arg1: i32) -> (i32, i32) {
    %c0_i32 = arith.constant 0 : i32
    %c0_i32_0 = arith.constant 0 : i32
    %c0_i32_1 = arith.constant 0 : i32
    return %c0_i32, %c0_i32_0 : i32, i32
  }
  func.func @transform_4(%arg0: i32, %arg1: i32) -> (i32, i32, i32) {
    %c0_i32 = arith.constant 0 : i32
    %c0_i32_0 = arith.constant 0 : i32
    return %arg0, %arg1, %c0_i32 : i32, i32, i32
  }
}

</mosaic_0001>

<llo_original>
// kernel: mul.7
$region0: #{mul.7}
  %s0 = inlined_call_operand.vmem [shape: f32[4,64], index: 0, kind: input, shape index: {}]
  %s1 = inlined_call_operand.vmem [shape: f32[256], index: 1, kind: output, shape index: {}]
  $region1: #{mul.7} parent=0
    #allocation0 [shape = 'u8[4096]{0}', space=vmem, size = 0x1000, scoped, tag = 'scoped mem for output reshape']
    #allocation1 [shape = 'u8[4096]{0}', space=vmem, size = 0x1000, scoped, tag = 'scoped mem for input reshape']
    %s3 = sshllo.u32 0, 4
    %v4 = vld [vmem:[%s0] sm:%s3]
    %5 = vst [vmem:[#allocation1] sm:%s3] %v4
    %s6 = smov 3
    %v7 = vld [vmem:[#allocation1] ss:$2 sm:%s6]
    %vm8 = vcmask 523264
    %9 = vst.msk [vmem:[#allocation0] sm:$0x3] %vm8, %v7
    %s10 = scalar_lea.vmem [#allocation1], 1
    %s11 = smov 3
    %v12 = vld [vmem:[%s10] ss:$2 sm:%s11]
    %13 = vrot.lane.b32.xlu0 %v12, 64
    %v14 = vpop.permute.xlu0 %13
    %vm15 = vcmask 1048064
    %16 = vst.msk [vmem:[#allocation0] sm:$0x3] %vm15, %v14
    %s18 = sshllo.u32 0, 2
    %v20 = vld [vmem:[#allocation0] sm:%s18]
    %s21 = sshllo.u32 0, 2
    %22 = vst [vmem:[%s1] sm:%s21] %v20

// kernel: tile.19
$region0: #{tile.19}
  %s0 = inlined_call_operand.vmem [shape: f32[4,64], index: 0, kind: input, shape index: {}]
  %s1 = inlined_call_operand.vmem [shape: f32[1,256], index: 1, kind: output, shape index: {}]
  $region1: #{tile.19} parent=0
    #allocation0 [shape = 'u8[8192]{0}', space=vmem, size = 0x2000, scoped, tag = 'scoped mem for output reshape']
    #allocation1 [shape = 'u8[4096]{0}', space=vmem, size = 0x1000, scoped, tag = 'scoped mem for input reshape']
    %s3 = sshllo.u32 0, 4
    %v4 = vld [vmem:[%s0] sm:%s3]
    %5 = vst [vmem:[#allocation1] sm:%s3] %v4
    %s6 = smov 3
    %v7 = vld [vmem:[#allocation1] ss:$2 sm:%s6]
    %vm8 = vcmask 523264
    %9 = vst.msk [vmem:[#allocation0] ss:$8 sm:$0x3] %vm8, %v7
    %s10 = scalar_lea.vmem [#allocation1], 1
    %s11 = smov 3
    %v12 = vld [vmem:[%s10] ss:$2 sm:%s11]
    %13 = vrot.lane.b32.xlu0 %v12, 64
    %v14 = vpop.permute.xlu0 %13
    %vm15 = vcmask 1048064
    %16 = vst.msk [vmem:[#allocation0] ss:$8 sm:$0x3] %vm15, %v14
    %s18 = sshllo.u32 0, 1
    %v20 = vld [vmem:[#allocation0] sm:%s18]
    %s21 = sshllo.u32 0, 1
    %22 = vst [vmem:[%s1] sm:%s21] %v20
    %s23 = scalar_lea.vmem [#allocation0], 8
    %v24 = vld [vmem:[%s23] sm:%s18]
    %s25 = sshllo.u32 0, 1
    %s26 = scalar_lea.vmem %s1, 1
    %27 = vst [vmem:[%s26] sm:%s25] %v24

// kernel: tile.18
$region0: #{tile.18}
  #allocation0 [shape = 's32[1]{0}', space=sflag, size = 0x4, scoped, tag = 'scoped memory for tile.18']
  %s0 = inlined_call_operand.vmem [shape: f32[64], index: 0, kind: input, shape index: {}]
  %s1 = inlined_call_operand.vmem [shape: f32[4,64], index: 1, kind: output, shape index: {}]
  // Predicated region
  $region2: #{tile.18} parent=0 // pred_check
    _
  $region3: #{tile.18} parent=0 // pred_check_branch
    %3 = sbr.rel (0) target = $region5
  $region4: #{tile.18} parent=0 // pred_region
    _
  $region5: #{tile.18} parent=0 // pred_fallthru
    _
  %v4 = vld [vmem:[%s0] ss:$0 sm:$0xff]
  %5 = vst [vmem:[%s1] sm:$0xf] %v4

// kernel: upsampler_block_forward.1
$region0: #{upsampler_block_forward.1}
  #allocation0 [shape = 'u32[]', space=smem, size = 0x4, offset = 0x4, fixed_abs, tag = 'smem constant byte address 0x4 - core index']
  #allocation1 [shape = 'u32[144,128]{1,0:T(1,128)}', space=vmem, size = 0x12000, scoped, tag = 'internal scratch']
  %s0 = inlined_call_operand.vmem [shape: bf16[2,17,17,128], index: 0, kind: input, shape index: {}, may-alias: {0,1}]
  %s1 = inlined_call_operand.vmem [shape: bf16[2,17,17,128], index: 1, kind: input, shape index: {}, may-alias: {0,1}]
  %s2 = inlined_call_operand.vmem [shape: bf16[512,256], index: 2, kind: input, shape index: {}]
  %s3 = inlined_call_operand.vmem [shape: f32[1,256], index: 3, kind: input, shape index: {}]
  %s4 = inlined_call_operand.vmem [shape: f32[2,256,256], index: 4, kind: output, shape index: {}]
  %s5 = sld [smem:[#allocation0]]
  $region49: #{upsampler_block_forward.1} parent=0
    _
  %s7 = ssub.s32 1, %s5
  %s8 = scalar_select 0, %s7, %s5
  loop: start=0, step=1, limit=6
  $region2: #{upsampler_block_forward.1} parent=0 // loop_pre_header
    _
  $region3: #{upsampler_block_forward.1} parent=0 // loop_header
    %s10 = sphi 0, %s14
    %p11 = scmp.ge.s32.totalorder %s10, 6
    %s17 = sphi 0, %s29
    %s18 = sphi 0, %s25
    %s19 = sphi 0, %s17
    %s20 = sphi 0, %s18
    %s21 = sphi 0, %s19
    %s22 = sphi 0, %s20
    %s34 = sphi 0, %s36
    %s37 = sphi 0, %s34
    %s38 = sphi 0, %s37
    %s54 = sphi 0, %s38
    %s66 = sphi 0, %s68
    %s69 = sphi 0, %s66
    %s70 = sphi 0, %s69
    %s86 = sphi 0, %s70
    %s90 = sphi 0, %s90
    %s92 = sphi 0, %s90
    %s93 = sphi 0, %s92
    %s107 = sphi 0, %s93
    %s111 = sphi 0, %s111
    %s113 = sphi 0, %s111
    %s114 = sphi 0, %s113
    %s128 = sphi 0, %s114
    %s136 = sphi 0, %s138
    %s139 = sphi 0, %s136
    %s140 = sphi 0, %s139
    %s156 = sphi 0, %s140
  $region4: #{upsampler_block_forward.1} parent=0 // loop_header_branch
    %13 = sbr.rel (%p11) target = $region8
  $region5: #{upsampler_block_forward.1} parent=0 // loop_body
    %s15 = ssub.s32 %s10, 1
    %s16 = ssub.s32 %s10, 2
    %s23 = sadd.s32 1, %s18
    %p24 = scmp.ge.s32.totalorder %s23, 2
    %s25 = scalar_select %p24, 0, %s23
    %s26 = sadd.s32 1, %s17
    %s27 = scalar_select %p24, %s26, %s17
    %p28 = scmp.ge.s32.totalorder %s27, 2
    %s29 = scalar_select %p28, 0, %s27
    %s30 = ssub.s32 %s17, %s29
    %s31 = ssub.s32 %s18, %s25
    %s32 = sor.u32 %s30, %s31
    %p33 = scmp.eq.s32.totalorder %s32, 0
    %s35 = sadd.s32 %s34, 1
    %s36 = scalar_select %p33, %s34, %s35
    %p39 = pneg %p33
    %p40 = scmp.eq.s32.totalorder %s10, 3
    %p41 = por %p39, %p40
    %p42 = scmp.ne.s32.totalorder %s34, %s37
    %p43 = scmp.eq.s32.totalorder %s10, 0
    %p44 = por %p42, %p43
    %p45 = scmp.ne.s32.totalorder %s34, %s37
    %p46 = scmp.eq.s32.totalorder %s15, 3
    %p47 = por %p45, %p46
    %p48 = scmp.ne.s32.totalorder %s37, %s38
    %p49 = scmp.eq.s32.totalorder %s15, 0
    %p50 = por %p48, %p49
    %p51 = scmp.ne.s32.totalorder %s37, %s38
    %p52 = scmp.eq.s32.totalorder %s16, 3
    %p53 = por %p51, %p52
    %p55 = scmp.ne.s32.totalorder %s38, %s54
    %p56 = scmp.eq.s32.totalorder %s16, 0
    %p57 = por %p55, %p56
    %s58 = sadd.s32 %s18, 1
    %s59 = smul.u32 %s58, 8
    %s60 = sadd.s32 %s25, 1
    %s61 = smul.u32 %s60, 8
    %s62 = ssub.s32 %s17, %s29
    %s63 = ssub.s32 %s59, %s61
    %s64 = sor.u32 %s62, %s63
    %p65 = scmp.eq.s32.totalorder %s64, 0
    %s67 = sadd.s32 %s66, 1
    %s68 = scalar_select %p65, %s66, %s67
    %p71 = pneg %p65
    %p72 = scmp.eq.s32.totalorder %s10, 3
    %p73 = por %p71, %p72
    %p74 = scmp.ne.s32.totalorder %s66, %s69
    %p75 = scmp.eq.s32.totalorder %s10, 0
    %p76 = por %p74, %p75
    %p77 = scmp.ne.s32.totalorder %s66, %s69
    %p78 = scmp.eq.s32.totalorder %s15, 3
    %p79 = por %p77, %p78
    %p80 = scmp.ne.s32.totalorder %s69, %s70
    %p81 = scmp.eq.s32.totalorder %s15, 0
    %p82 = por %p80, %p81
    %p83 = scmp.ne.s32.totalorder %s69, %s70
    %p84 = scmp.eq.s32.totalorder %s16, 3
    %p85 = por %p83, %p84
    %p87 = scmp.ne.s32.totalorder %s70, %s86
    %p88 = scmp.eq.s32.totalorder %s16, 0
    %p89 = por %p87, %p88
    %s91 = sadd.s32 %s90, 1
    %p94 = scmp.eq.s32.totalorder %s10, 3
    %p95 = scmp.ne.s32.totalorder %s90, %s92
    %p96 = scmp.eq.s32.totalorder %s10, 0
    %p97 = por %p95, %p96
    %p98 = scmp.ne.s32.totalorder %s90, %s92
    %p99 = scmp.eq.s32.totalorder %s15, 3
    %p100 = por %p98, %p99
    %p101 = scmp.ne.s32.totalorder %s92, %s93
    %p102 = scmp.eq.s32.totalorder %s15, 0
    %p103 = por %p101, %p102
    %p104 = scmp.ne.s32.totalorder %s92, %s93
    %p105 = scmp.eq.s32.totalorder %s16, 3
    %p106 = por %p104, %p105
    %p108 = scmp.ne.s32.totalorder %s93, %s107
    %p109 = scmp.eq.s32.totalorder %s16, 0
    %p110 = por %p108, %p109
    %s112 = sadd.s32 %s111, 1
    %p115 = scmp.eq.s32.totalorder %s10, 3
    %p116 = scmp.ne.s32.totalorder %s111, %s113
    %p117 = scmp.eq.s32.totalorder %s10, 0
    %p118 = por %p116, %p117
    %p119 = scmp.ne.s32.totalorder %s111, %s113
    %p120 = scmp.eq.s32.totalorder %s15, 3
    %p121 = por %p119, %p120
    %p122 = scmp.ne.s32.totalorder %s113, %s114
    %p123 = scmp.eq.s32.totalorder %s15, 0
    %p124 = por %p122, %p123
    %p125 = scmp.ne.s32.totalorder %s113, %s114
    %p126 = scmp.eq.s32.totalorder %s16, 3
    %p127 = por %p125, %p126
    %p129 = scmp.ne.s32.totalorder %s114, %s128
    %p130 = scmp.eq.s32.totalorder %s16, 0
    %p131 = por %p129, %p130
    %s132 = ssub.s32 %s17, %s29
    %s133 = ssub.s32 %s18, %s25
    %s134 = sor.u32 %s132, %s133
    %p135 = scmp.eq.s32.totalorder %s134, 0
    %s137 = sadd.s32 %s136, 1
    %s138 = scalar_select %p135, %s136, %s137
    %p141 = pneg %p135
    %p142 = scmp.eq.s32.totalorder %s10, 3
    %p143 = por %p141, %p142
    %p144 = scmp.ne.s32.totalorder %s136, %s139
    %p145 = scmp.eq.s32.totalorder %s10, 0
    %p146 = por %p144, %p145
    %p147 = scmp.ne.s32.totalorder %s136, %s139
    %p148 = scmp.eq.s32.totalorder %s15, 3
    %p149 = por %p147, %p148
    %p150 = scmp.ne.s32.totalorder %s139, %s140
    %p151 = scmp.eq.s32.totalorder %s15, 0
    %p152 = por %p150, %p151
    %p153 = scmp.ne.s32.totalorder %s139, %s140
    %p154 = scmp.eq.s32.totalorder %s16, 3
    %p155 = por %p153, %p154
    %p157 = scmp.ne.s32.totalorder %s140, %s156
    %p158 = scmp.eq.s32.totalorder %s16, 0
    %p159 = por %p157, %p158
    %p160 = scmp.le.s32.totalorder 1, %s10
    %p161 = scmp.lt.s32.totalorder %s10, 5
    %p162 = pnand %p160, %p161
    %p163 = pneg %p162
    // Predicated region
    $region9: #{upsampler_block_forward.1} parent=5 // pred_check
      _
    $region10: #{upsampler_block_forward.1} parent=5 // pred_check_branch
      %165 = sbr.rel (%p162) target = $region12
    $region11: #{upsampler_block_forward.1} parent=5 // pred_region
      %s166 = ssub.s32 %s10, 1
      // Predicated region
      $region13: #{upsampler_block_forward.1} parent=11 // pred_check
        %p167 = pneg %p103
      $region14: #{upsampler_block_forward.1} parent=11 // pred_check_branch
        %169 = sbr.rel (%p167) target = $region16
      $region15: #{upsampler_block_forward.1} parent=11 // pred_region
        _
      $region16: #{upsampler_block_forward.1} parent=11 // pred_fallthru
        _
      // Predicated region
      $region17: #{upsampler_block_forward.1} parent=11 // pred_check
        %p170 = pneg %p124
      $region18: #{upsampler_block_forward.1} parent=11 // pred_check_branch
        %172 = sbr.rel (%p170) target = $region20
      $region19: #{upsampler_block_forward.1} parent=11 // pred_region
        _
      $region20: #{upsampler_block_forward.1} parent=11 // pred_fallthru
        _
    $region12: #{upsampler_block_forward.1} parent=5 // pred_fallthru
      _
    %p173 = scmp.lt.s32.totalorder %s10, 4
    // Predicated region
    $region21: #{upsampler_block_forward.1} parent=5 // pred_check
      %p174 = pneg %p173
    $region22: #{upsampler_block_forward.1} parent=5 // pred_check_branch
      %176 = sbr.rel (%p174) target = $region24
    $region23: #{upsampler_block_forward.1} parent=5 // pred_region
      // Predicated region
      $region25: #{upsampler_block_forward.1} parent=23 // pred_check
        %p177 = pneg %p44
      $region26: #{upsampler_block_forward.1} parent=23 // pred_check_branch
        %179 = sbr.rel (%p177) target = $region28
      $region27: #{upsampler_block_forward.1} parent=23 // pred_region
        %s180 = smul.u32 8, %s18
        %s181 = ssub.s32 17, %s180
        %p182 = scmp.lt.s32.totalorder %s181, 8
        %s183 = scalar_select %p182, %s181, 8
        %s184 = smul.u32 64, %s183
        %s185 = smul.u32 %s184, 3
        %p186 = scmp.lt.s32.totalorder %s17, 1
        %s187 = scalar_select %p186, %s17, 1
        %p188 = scmp.lt.s32.totalorder %s180, 16
        %s189 = scalar_select %p188, %s180, 16
        %s190 = smul.addr %s189, 3
        %s191 = smul.addr %s187, 51
        %s192 = sadd.s32 %s190, %s191
        %s193 = smul.addr %s192, 4
        %s194 = scalar_lea.vmem %s0, %s193
        %s195 = smul.u32 8, %s18
        %s196 = ssub.s32 17, %s195
        %p197 = scmp.lt.s32.totalorder %s196, 8
        %s198 = scalar_select %p197, %s196, 8
        %s199 = smul.u32 64, %s198
        %s200 = smul.u32 %s199, 3
      $region28: #{upsampler_block_forward.1} parent=23 // pred_fallthru
        _
      // Predicated region
      $region29: #{upsampler_block_forward.1} parent=23 // pred_check
        %p201 = pneg %p76
      $region30: #{upsampler_block_forward.1} parent=23 // pred_check_branch
        %203 = sbr.rel (%p201) target = $region32
      $region31: #{upsampler_block_forward.1} parent=23 // pred_region
        %s204 = sadd.s32 %s18, 1
        %s205 = smul.u32 %s204, 8
        %p206 = scmp.lt.s32.totalorder %s17, 1
        %s207 = scalar_select %p206, %s17, 1
        %p208 = scmp.lt.s32.totalorder %s205, 16
        %s209 = scalar_select %p208, %s205, 16
        %s210 = smul.addr %s209, 3
        %s211 = smul.addr %s207, 51
        %s212 = sadd.s32 %s210, %s211
        %s213 = smul.addr %s212, 4
        %s214 = scalar_lea.vmem %s1, %s213
        %s215 = sadd.s32 %s18, 1
        %s216 = smul.u32 %s215, 8
      $region32: #{upsampler_block_forward.1} parent=23 // pred_fallthru
        _
    $region24: #{upsampler_block_forward.1} parent=5 // pred_fallthru
      _
    %p217 = scmp.le.s32.totalorder 1, %s10
    %p218 = scmp.lt.s32.totalorder %s10, 5
    %p219 = pnand %p217, %p218
    %p220 = pneg %p219
    // Predicated region
    $region33: #{upsampler_block_forward.1} parent=5 // pred_check
      _
    $region34: #{upsampler_block_forward.1} parent=5 // pred_check_branch
      %222 = sbr.rel (%p219) target = $region36
    $region35: #{upsampler_block_forward.1} parent=5 // pred_region
      %s223 = ssub.s32 %s10, 1
      %s224 = smul.u32 8, %s20
      %s225 = ssub.s32 17, %s224
      %p226 = scmp.lt.s32.totalorder %s225, 8
      %s227 = scalar_select %p226, %s225, 8
      %s228 = smul.u32 64, %s227
      %s229 = smul.u32 %s228, 3
      %p230 = scmp.lt.s32.totalorder %s19, 1
      %s231 = scalar_select %p230, %s19, 1
      %p232 = scmp.lt.s32.totalorder %s224, 16
      %s233 = scalar_select %p232, %s224, 16
      %s234 = smul.addr %s233, 3
      %s235 = smul.addr %s231, 51
      %s236 = sadd.s32 %s234, %s235
      %s237 = smul.addr %s236, 4
      %s238 = scalar_lea.vmem %s0, %s237
      %p239 = pneg %p50
      %p240 = pneg %p47
      %s241 = sadd.s32 %s20, 1
      %s242 = smul.u32 %s241, 8
      %p243 = scmp.lt.s32.totalorder %s19, 1
      %s244 = scalar_select %p243, %s19, 1
      %p245 = scmp.lt.s32.totalorder %s242, 16
      %s246 = scalar_select %p245, %s242, 16
      %s247 = smul.addr %s246, 3
      %s248 = smul.addr %s244, 51
      %s249 = sadd.s32 %s247, %s248
      %s250 = smul.addr %s249, 4
      %s251 = scalar_lea.vmem %s1, %s250
      %p252 = pneg %p82
      %p253 = pneg %p79
      %p254 = pneg %p103
      %p255 = pneg %p100
      %p256 = pneg %p124
      %p257 = pneg %p121
      %p258 = pneg %p152
      %p259 = pneg %p149
      %s260 = smul.u32 16, %s20
      %p261 = scmp.lt.s32.totalorder %s19, 1
      %s262 = scalar_select %p261, %s19, 1
      %p263 = scmp.lt.s32.totalorder %s260, 31
      %s264 = scalar_select %p263, %s260, 31
      %s265 = smul.addr %s264, 2
      %s266 = smul.addr %s262, 64
      %s267 = sadd.s32 %s265, %s266
      %s268 = smul.addr %s267, 8
      %s269 = scalar_lea.vmem %s4, %s268
      %s270 = smul.u32 8, %s20
      %s271 = ssub.s32 17, %s270
      %p272 = scmp.lt.s32.totalorder %s271, 8
      %s273 = scalar_select %p272, %s271, 8
      %s274 = smul.u32 64, %s273
      %s275 = smul.u32 %s274, 3
      %p276 = scmp.lt.s32.totalorder %s19, 1
      %s277 = scalar_select %p276, %s19, 1
      %p278 = scmp.lt.s32.totalorder %s270, 16
      %s279 = scalar_select %p278, %s270, 16
      %s280 = smul.addr %s279, 3
      %s281 = smul.addr %s277, 51
      %s282 = sadd.s32 %s280, %s281
      %s283 = smul.addr %s282, 4
      %s284 = scalar_lea.vmem %s0, %s283
      %s285 = smul.u32 8, %s20
      %s286 = ssub.s32 17, %s285
      %p287 = scmp.lt.s32.totalorder %s286, 8
      %s288 = scalar_select %p287, %s286, 8
      %s289 = smul.u32 64, %s288
      %s290 = smul.u32 %s289, 3
      %s291 = sadd.s32 %s20, 1
      %s292 = smul.u32 %s291, 8
      %p293 = scmp.lt.s32.totalorder %s19, 1
      %s294 = scalar_select %p293, %s19, 1
      %p295 = scmp.lt.s32.totalorder %s292, 16
      %s296 = scalar_select %p295, %s292, 16
      %s297 = smul.addr %s296, 3
      %s298 = smul.addr %s294, 51
      %s299 = sadd.s32 %s297, %s298
      %s300 = smul.addr %s299, 4
      %s301 = scalar_lea.vmem %s1, %s300
      %s302 = sadd.s32 %s20, 1
      %s303 = smul.u32 %s302, 8
      %s304 = smul.u32 16, %s20
      %p305 = scmp.lt.s32.totalorder %s19, 1
      %s306 = scalar_select %p305, %s19, 1
      %p307 = scmp.lt.s32.totalorder %s304, 31
      %s308 = scalar_select %p307, %s304, 31
      %s309 = smul.addr %s308, 2
      %s310 = smul.addr %s306, 64
      %s311 = sadd.s32 %s309, %s310
      %s312 = smul.addr %s311, 8
      %s313 = scalar_lea.vmem %s4, %s312
      %s314 = smul.u32 16, %s20
      %v315 = vld [vmem:[%s284] sm:$0xf]
      %v316 = vld [vmem:[%s284 + $0x4] sm:$0xf]
      %v317 = vld [vmem:[%s284 + $0x8] sm:$0x1]
      %v318 = vld [vmem:[%s284 + $0xc] sm:$0xf]
      %v319 = vld [vmem:[%s284 + $0x10] sm:$0xf]
      %v320 = vld [vmem:[%s284 + $0x14] sm:$0x1]
      %v321 = vld [vmem:[%s284 + $0x18] sm:$0xf]
      %v322 = vld [vmem:[%s284 + $0x1c] sm:$0xf]
      %v323 = vld [vmem:[%s284 + $0x20] sm:$0x1]
      %v324 = vld [vmem:[%s284 + $0x24] sm:$0xf]
      %v325 = vld [vmem:[%s284 + $0x28] sm:$0xf]
      %v326 = vld [vmem:[%s284 + $0x2c] sm:$0x1]
      %v327 = vld [vmem:[%s284 + $0x30] sm:$0xf]
      %v328 = vld [vmem:[%s284 + $0x34] sm:$0xf]
      %v329 = vld [vmem:[%s284 + $0x38] sm:$0x1]
      %v330 = vld [vmem:[%s284 + $0x3c] sm:$0xf]
      %v331 = vld [vmem:[%s284 + $0x40] sm:$0xf]
      %v332 = vld [vmem:[%s284 + $0x44] sm:$0x1]
      %v333 = vld [vmem:[%s284 + $0x48] sm:$0xf]
      %v334 = vld [vmem:[%s284 + $0x4c] sm:$0xf]
      %v335 = vld [vmem:[%s284 + $0x50] sm:$0x1]
      %v336 = vld [vmem:[%s284 + $0x54] sm:$0xf]
      %v337 = vld [vmem:[%s284 + $0x58] sm:$0xf]
      %v338 = vld [vmem:[%s284 + $0x5c] sm:$0x1]
      %v339 = vld [vmem:[%s301] sm:$0xf]
      %v340 = vld [vmem:[%s301 + $0x4] sm:$0xf]
      %v341 = vld [vmem:[%s301 + $0x8] sm:$0x1]
      %vm342 = vsmask.f32 3328
      %vm343 = vsmask.f32 7440
      %vm344 = vmor %vm342, %vm343
      %v346 = vshrl.u32 %v315, 16
      %v348 = vrot.slane %v346, 4
      %v349 = vshll.u32 %v315, 16
      %v351 = vrot.slane %v349, 5
      %v352 = vor.u32 %v348, %v351
      %v353 = vrot.slane %v352, 4
      %v355 = vshll.u32 %v316, 16
      %v357 = vrot.slane %v355, 5
      %v358 = vsel %vm344, %v353, %v357
      %v359 = vshrl.u32 %v316, 16
      %v361 = vrot.slane %v359, 4
      %v362 = vor.u32 %v361, %v357
      %v363 = vrot.slane %v362, 4
      %v365 = vshll.u32 %v317, 16
      %v367 = vrot.slane %v365, 5
      %v368 = vsel %vm344, %v363, %v367
      %v370 = vshrl.u32 %v318, 16
      %v372 = vrot.slane %v370, 4
      %v373 = vshll.u32 %v318, 16
      %v375 = vrot.slane %v373, 5
      %v376 = vor.u32 %v372, %v375
      %v377 = vrot.slane %v376, 4
      %v379 = vshll.u32 %v319, 16
      %v381 = vrot.slane %v379, 5
      %v382 = vsel %vm344, %v377, %v381
      %v383 = vshrl.u32 %v319, 16
      %v385 = vrot.slane %v383, 4
      %v386 = vor.u32 %v385, %v381
      %v387 = vrot.slane %v386, 4
      %v389 = vshll.u32 %v320, 16
      %v391 = vrot.slane %v389, 5
      %v392 = vsel %vm344, %v387, %v391
      %v394 = vshrl.u32 %v321, 16
      %v396 = vrot.slane %v394, 4
      %v397 = vshll.u32 %v321, 16
      %v399 = vrot.slane %v397, 5
      %v400 = vor.u32 %v396, %v399
      %v401 = vrot.slane %v400, 4
      %v403 = vshll.u32 %v322, 16
      %v405 = vrot.slane %v403, 5
      %v406 = vsel %vm344, %v401, %v405
      %v407 = vshrl.u32 %v322, 16
      %v409 = vrot.slane %v407, 4
      %v410 = vor.u32 %v409, %v405
      %v411 = vrot.slane %v410, 4
      %v413 = vshll.u32 %v323, 16
      %v415 = vrot.slane %v413, 5
      %v416 = vsel %vm344, %v411, %v415
      %v418 = vshrl.u32 %v324, 16
      %v420 = vrot.slane %v418, 4
      %v421 = vshll.u32 %v324, 16
      %v423 = vrot.slane %v421, 5
      %v424 = vor.u32 %v420, %v423
      %v425 = vrot.slane %v424, 4
      %v427 = vshll.u32 %v325, 16
      %v429 = vrot.slane %v427, 5
      %v430 = vsel %vm344, %v425, %v429
      %v431 = vshrl.u32 %v325, 16
      %v433 = vrot.slane %v431, 4
      %v434 = vor.u32 %v433, %v429
      %v435 = vrot.slane %v434, 4
      %v437 = vshll.u32 %v326, 16
      %v439 = vrot.slane %v437, 5
      %v440 = vsel %vm344, %v435, %v439
      %v442 = vshrl.u32 %v327, 16
      %v444 = vrot.slane %v442, 4
      %v445 = vshll.u32 %v327, 16
      %v447 = vrot.slane %v445, 5
      %v448 = vor.u32 %v444, %v447
      %v449 = vrot.slane %v448, 4
      %v451 = vshll.u32 %v328, 16
      %v453 = vrot.slane %v451, 5
      %v454 = vsel %vm344, %v449, %v453
      %v455 = vshrl.u32 %v328, 16
      %v457 = vrot.slane %v455, 4
      %v458 = vor.u32 %v457, %v453
      %v459 = vrot.slane %v458, 4
      %v461 = vshll.u32 %v329, 16
      %v463 = vrot.slane %v461, 5
      %v464 = vsel %vm344, %v459, %v463
      %v466 = vshrl.u32 %v330, 16
      %v468 = vrot.slane %v466, 4
      %v469 = vshll.u32 %v330, 16
      %v471 = vrot.slane %v469, 5
      %v472 = vor.u32 %v468, %v471
      %v473 = vrot.slane %v472, 4
      %v475 = vshll.u32 %v331, 16
      %v477 = vrot.slane %v475, 5
      %v478 = vsel %vm344, %v473, %v477
      %v479 = vshrl.u32 %v331, 16
      %v481 = vrot.slane %v479, 4
      %v482 = vor.u32 %v481, %v477
      %v483 = vrot.slane %v482, 4
      %v485 = vshll.u32 %v332, 16
      %v487 = vrot.slane %v485, 5
      %v488 = vsel %vm344, %v483, %v487
      %v490 = vshrl.u32 %v333, 16
      %v492 = vrot.slane %v490, 4
      %v493 = vshll.u32 %v333, 16
      %v495 = vrot.slane %v493, 5
      %v496 = vor.u32 %v492, %v495
      %v497 = vrot.slane %v496, 4
      %v499 = vshll.u32 %v334, 16
      %v501 = vrot.slane %v499, 5
      %v502 = vsel %vm344, %v497, %v501
      %v503 = vshrl.u32 %v334, 16
      %v505 = vrot.slane %v503, 4
      %v506 = vor.u32 %v505, %v501
      %v507 = vrot.slane %v506, 4
      %v509 = vshll.u32 %v335, 16
      %v511 = vrot.slane %v509, 5
      %v512 = vsel %vm344, %v507, %v511
      %v514 = vshrl.u32 %v336, 16
      %v516 = vrot.slane %v514, 4
      %v517 = vshll.u32 %v336, 16
      %v519 = vrot.slane %v517, 5
      %v520 = vor.u32 %v516, %v519
      %v521 = vrot.slane %v520, 4
      %v523 = vshll.u32 %v337, 16
      %v525 = vrot.slane %v523, 5
      %v526 = vsel %vm344, %v521, %v525
      %v527 = vshrl.u32 %v337, 16
      %v529 = vrot.slane %v527, 4
      %v530 = vor.u32 %v529, %v525
      %v531 = vrot.slane %v530, 4
      %v533 = vshll.u32 %v338, 16
      %v535 = vrot.slane %v533, 5
      %v536 = vsel %vm344, %v531, %v535
      %v538 = vshrl.u32 %v339, 16
      %v540 = vrot.slane %v538, 4
      %v541 = vshll.u32 %v339, 16
      %v543 = vrot.slane %v541, 5
      %v544 = vor.u32 %v540, %v543
      %v545 = vrot.slane %v544, 4
      %v547 = vshll.u32 %v340, 16
      %v549 = vrot.slane %v547, 5
      %v550 = vsel %vm344, %v545, %v549
      %v551 = vshrl.u32 %v340, 16
      %v553 = vrot.slane %v551, 4
      %v554 = vor.u32 %v553, %v549
      %v555 = vrot.slane %v554, 4
      %v557 = vshll.u32 %v341, 16
      %v559 = vrot.slane %v557, 5
      %v560 = vsel %vm344, %v555, %v559
      %v577 = vunpack.c.l.b16 %v315
      %v578 = vunpack.c.l.b16 %v316
      %v579 = vunpack.c.l.b16 %v318
      %v580 = vunpack.c.l.b16 %v319
      %v581 = vunpack.c.l.b16 %v321
      %v582 = vunpack.c.l.b16 %v322
      %v583 = vunpack.c.l.b16 %v324
      %v584 = vunpack.c.l.b16 %v325
      %v585 = vunpack.c.l.b16 %v327
      %v586 = vunpack.c.l.b16 %v328
      %v587 = vunpack.c.l.b16 %v330
      %v588 = vunpack.c.l.b16 %v331
      %v589 = vunpack.c.l.b16 %v333
      %v590 = vunpack.c.l.b16 %v334
      %v591 = vunpack.c.l.b16 %v336
      %v592 = vunpack.c.l.b16 %v337
      %v593 = vpack.c.b16 %v578, %v577
      %v594 = vpack.c.b16 %v580, %v579
      %v595 = vpack.c.b16 %v582, %v581
      %v596 = vpack.c.b16 %v584, %v583
      %v597 = vpack.c.b16 %v586, %v585
      %v598 = vpack.c.b16 %v588, %v587
      %v599 = vpack.c.b16 %v590, %v589
      %v600 = vpack.c.b16 %v592, %v591
      %v609 = vunpack.c.l.b16 %v358
      %v610 = vunpack.c.l.b16 %v368
      %v611 = vunpack.c.l.b16 %v382
      %v612 = vunpack.c.l.b16 %v392
      %v613 = vunpack.c.l.b16 %v406
      %v614 = vunpack.c.l.b16 %v416
      %v615 = vunpack.c.l.b16 %v430
      %v616 = vunpack.c.l.b16 %v440
      %v617 = vunpack.c.l.b16 %v454
      %v618 = vunpack.c.l.b16 %v464
      %v619 = vunpack.c.l.b16 %v478
      %v620 = vunpack.c.l.b16 %v488
      %v621 = vunpack.c.l.b16 %v502
      %v622 = vunpack.c.l.b16 %v512
      %v623 = vunpack.c.l.b16 %v526
      %v624 = vunpack.c.l.b16 %v536
      %v625 = vpack.c.b16 %v610, %v609
      %v626 = vpack.c.b16 %v612, %v611
      %v627 = vpack.c.b16 %v614, %v613
      %v628 = vpack.c.b16 %v616, %v615
      %v629 = vpack.c.b16 %v618, %v617
      %v630 = vpack.c.b16 %v620, %v619
      %v631 = vpack.c.b16 %v622, %v621
      %v632 = vpack.c.b16 %v624, %v623
      %v643 = vunpack.c.l.b16 %v339
      %v644 = vunpack.c.l.b16 %v340
      %v645 = vpack.c.b16 %v644, %v643
      %v647 = vunpack.c.l.b16 %v550
      %v648 = vunpack.c.l.b16 %v560
      %v649 = vpack.c.b16 %v648, %v647
      %v651 = vld [vmem:[%s2] sm:$0xff]
      %v652 = vld [vmem:[%s2 + $0x8] sm:$0xff]
      %v653 = vld [vmem:[%s2 + $0x10] sm:$0xff]
      %v654 = vld [vmem:[%s2 + $0x18] sm:$0xff]
      %v655 = vld [vmem:[%s2 + $0x20] sm:$0xff]
      %v656 = vld [vmem:[%s2 + $0x28] sm:$0xff]
      %v657 = vld [vmem:[%s2 + $0x30] sm:$0xff]
      %v658 = vld [vmem:[%s2 + $0x38] sm:$0xff]
      %v659 = vld [vmem:[%s2 + $0x40] sm:$0xff]
      %v660 = vld [vmem:[%s2 + $0x48] sm:$0xff]
      %v661 = vld [vmem:[%s2 + $0x50] sm:$0xff]
      %v662 = vld [vmem:[%s2 + $0x58] sm:$0xff]
      %v663 = vld [vmem:[%s2 + $0x60] sm:$0xff]
      %v664 = vld [vmem:[%s2 + $0x68] sm:$0xff]
      %v665 = vld [vmem:[%s2 + $0x70] sm:$0xff]
      %v666 = vld [vmem:[%s2 + $0x78] sm:$0xff]
      %v667 = vld [vmem:[%s2 + $0x80] sm:$0xff]
      %v668 = vld [vmem:[%s2 + $0x88] sm:$0xff]
      %v669 = vld [vmem:[%s2 + $0x90] sm:$0xff]
      %v670 = vld [vmem:[%s2 + $0x98] sm:$0xff]
      %v671 = vld [vmem:[%s2 + $0xa0] sm:$0xff]
      %v672 = vld [vmem:[%s2 + $0xa8] sm:$0xff]
      %v673 = vld [vmem:[%s2 + $0xb0] sm:$0xff]
      %v674 = vld [vmem:[%s2 + $0xb8] sm:$0xff]
      %v675 = vld [vmem:[%s2 + $0xc0] sm:$0xff]
      %v676 = vld [vmem:[%s2 + $0xc8] sm:$0xff]
      %v677 = vld [vmem:[%s2 + $0xd0] sm:$0xff]
      %v678 = vld [vmem:[%s2 + $0xd8] sm:$0xff]
      %v679 = vld [vmem:[%s2 + $0xe0] sm:$0xff]
      %v680 = vld [vmem:[%s2 + $0xe8] sm:$0xff]
      %v681 = vld [vmem:[%s2 + $0xf0] sm:$0xff]
      %v682 = vld [vmem:[%s2 + $0xf8] sm:$0xff]
      %v683 = vld [vmem:[%s2 + $0x100] sm:$0xff]
      %v684 = vld [vmem:[%s2 + $0x108] sm:$0xff]
      %v685 = vld [vmem:[%s2 + $0x110] sm:$0xff]
      %v686 = vld [vmem:[%s2 + $0x118] sm:$0xff]
      %v687 = vld [vmem:[%s2 + $0x120] sm:$0xff]
      %v688 = vld [vmem:[%s2 + $0x128] sm:$0xff]
      %v689 = vld [vmem:[%s2 + $0x130] sm:$0xff]
      %v690 = vld [vmem:[%s2 + $0x138] sm:$0xff]
      %v691 = vld [vmem:[%s2 + $0x140] sm:$0xff]
      %v692 = vld [vmem:[%s2 + $0x148] sm:$0xff]
      %v693 = vld [vmem:[%s2 + $0x150] sm:$0xff]
      %v694 = vld [vmem:[%s2 + $0x158] sm:$0xff]
      %v695 = vld [vmem:[%s2 + $0x160] sm:$0xff]
      %v696 = vld [vmem:[%s2 + $0x168] sm:$0xff]
      %v697 = vld [vmem:[%s2 + $0x170] sm:$0xff]
      %v698 = vld [vmem:[%s2 + $0x178] sm:$0xff]
      %v699 = vld [vmem:[%s2 + $0x180] sm:$0xff]
      %v700 = vld [vmem:[%s2 + $0x188] sm:$0xff]
      %v701 = vld [vmem:[%s2 + $0x190] sm:$0xff]
      %v702 = vld [vmem:[%s2 + $0x198] sm:$0xff]
      %v703 = vld [vmem:[%s2 + $0x1a0] sm:$0xff]
      %v704 = vld [vmem:[%s2 + $0x1a8] sm:$0xff]
      %v705 = vld [vmem:[%s2 + $0x1b0] sm:$0xff]
      %v706 = vld [vmem:[%s2 + $0x1b8] sm:$0xff]
      %v707 = vld [vmem:[%s2 + $0x1c0] sm:$0xff]
      %v708 = vld [vmem:[%s2 + $0x1c8] sm:$0xff]
      %v709 = vld [vmem:[%s2 + $0x1d0] sm:$0xff]
      %v710 = vld [vmem:[%s2 + $0x1d8] sm:$0xff]
      %v711 = vld [vmem:[%s2 + $0x1e0] sm:$0xff]
      %v712 = vld [vmem:[%s2 + $0x1e8] sm:$0xff]
      %v713 = vld [vmem:[%s2 + $0x1f0] sm:$0xff]
      %v714 = vld [vmem:[%s2 + $0x1f8] sm:$0xff]
      %v715 = vld [vmem:[%s3] sm:$0x3]
      %v717 = vlaneseq
      %v718 = vshrl.u32 %v717, 7
      %v719 = vsub.s32 0, %v718
      %v720 = vrot.slane %v715, %v719
      %v721 = vlaneseq
      %v722 = vshrl.u32 %v721, 7
      %v723 = vsub.s32 1, %v722
      %v724 = vrot.slane %v715, %v723
      %v791 = vunpack.c.l.b16 %v651
      %v792 = vunpack.c.h.b16 %v651
      %v793 = vunpack.c.l.b16 %v652
      %v794 = vunpack.c.h.b16 %v652
      %v795 = vunpack.c.l.b16 %v653
      %v796 = vunpack.c.h.b16 %v653
      %v797 = vunpack.c.l.b16 %v654
      %v798 = vunpack.c.h.b16 %v654
      %v799 = vunpack.c.l.b16 %v655
      %v800 = vunpack.c.h.b16 %v655
      %v801 = vunpack.c.l.b16 %v656
      %v802 = vunpack.c.h.b16 %v656
      %v803 = vunpack.c.l.b16 %v657
      %v804 = vunpack.c.h.b16 %v657
      %v805 = vunpack.c.l.b16 %v658
      %v806 = vunpack.c.h.b16 %v658
      %v807 = vunpack.c.l.b16 %v659
      %v808 = vunpack.c.h.b16 %v659
      %v809 = vunpack.c.l.b16 %v660
      %v810 = vunpack.c.h.b16 %v660
      %v811 = vunpack.c.l.b16 %v661
      %v812 = vunpack.c.h.b16 %v661
      %v813 = vunpack.c.l.b16 %v662
      %v814 = vunpack.c.h.b16 %v662
      %v815 = vunpack.c.l.b16 %v663
      %v816 = vunpack.c.h.b16 %v663
      %v817 = vunpack.c.l.b16 %v664
      %v818 = vunpack.c.h.b16 %v664
      %v819 = vunpack.c.l.b16 %v665
      %v820 = vunpack.c.h.b16 %v665
      %v821 = vunpack.c.l.b16 %v666
      %v822 = vunpack.c.h.b16 %v666
      %v823 = vunpack.c.l.b16 %v667
      %v824 = vunpack.c.h.b16 %v667
      %v825 = vunpack.c.l.b16 %v668
      %v826 = vunpack.c.h.b16 %v668
      %v827 = vunpack.c.l.b16 %v669
      %v828 = vunpack.c.h.b16 %v669
      %v829 = vunpack.c.l.b16 %v670
      %v830 = vunpack.c.h.b16 %v670
      %v831 = vunpack.c.l.b16 %v671
      %v832 = vunpack.c.h.b16 %v671
      %v833 = vunpack.c.l.b16 %v672
      %v834 = vunpack.c.h.b16 %v672
      %v835 = vunpack.c.l.b16 %v673
      %v836 = vunpack.c.h.b16 %v673
      %v837 = vunpack.c.l.b16 %v674
      %v838 = vunpack.c.h.b16 %v674
      %v839 = vunpack.c.l.b16 %v675
      %v840 = vunpack.c.h.b16 %v675
      %v841 = vunpack.c.l.b16 %v676
      %v842 = vunpack.c.h.b16 %v676
      %v843 = vunpack.c.l.b16 %v677
      %v844 = vunpack.c.h.b16 %v677
      %v845 = vunpack.c.l.b16 %v678
      %v846 = vunpack.c.h.b16 %v678
      %v847 = vunpack.c.l.b16 %v679
      %v848 = vunpack.c.h.b16 %v679
      %v849 = vunpack.c.l.b16 %v680
      %v850 = vunpack.c.h.b16 %v680
      %v851 = vunpack.c.l.b16 %v681
      %v852 = vunpack.c.h.b16 %v681
      %v853 = vunpack.c.l.b16 %v682
      %v854 = vunpack.c.h.b16 %v682
      %v855 = vunpack.c.l.b16 %v683
      %v856 = vunpack.c.h.b16 %v683
      %v857 = vunpack.c.l.b16 %v684
      %v858 = vunpack.c.h.b16 %v684
      %v859 = vunpack.c.l.b16 %v685
      %v860 = vunpack.c.h.b16 %v685
      %v861 = vunpack.c.l.b16 %v686
      %v862 = vunpack.c.h.b16 %v686
      %v863 = vunpack.c.l.b16 %v687
      %v864 = vunpack.c.h.b16 %v687
      %v865 = vunpack.c.l.b16 %v688
      %v866 = vunpack.c.h.b16 %v688
      %v867 = vunpack.c.l.b16 %v689
      %v868 = vunpack.c.h.b16 %v689
      %v869 = vunpack.c.l.b16 %v690
      %v870 = vunpack.c.h.b16 %v690
      %v871 = vunpack.c.l.b16 %v691
      %v872 = vunpack.c.h.b16 %v691
      %v873 = vunpack.c.l.b16 %v692
      %v874 = vunpack.c.h.b16 %v692
      %v875 = vunpack.c.l.b16 %v693
      %v876 = vunpack.c.h.b16 %v693
      %v877 = vunpack.c.l.b16 %v694
      %v878 = vunpack.c.h.b16 %v694
      %v879 = vunpack.c.l.b16 %v695
      %v880 = vunpack.c.h.b16 %v695
      %v881 = vunpack.c.l.b16 %v696
      %v882 = vunpack.c.h.b16 %v696
      %v883 = vunpack.c.l.b16 %v697
      %v884 = vunpack.c.h.b16 %v697
      %v885 = vunpack.c.l.b16 %v698
      %v886 = vunpack.c.h.b16 %v698
      %v887 = vunpack.c.l.b16 %v699
      %v888 = vunpack.c.h.b16 %v699
      %v889 = vunpack.c.l.b16 %v700
      %v890 = vunpack.c.h.b16 %v700
      %v891 = vunpack.c.l.b16 %v701
      %v892 = vunpack.c.h.b16 %v701
      %v893 = vunpack.c.l.b16 %v702
      %v894 = vunpack.c.h.b16 %v702
      %v895 = vunpack.c.l.b16 %v703
      %v896 = vunpack.c.h.b16 %v703
      %v897 = vunpack.c.l.b16 %v704
      %v898 = vunpack.c.h.b16 %v704
      %v899 = vunpack.c.l.b16 %v705
      %v900 = vunpack.c.h.b16 %v705
      %v901 = vunpack.c.l.b16 %v706
      %v902 = vunpack.c.h.b16 %v706
      %v903 = vunpack.c.l.b16 %v707
      %v904 = vunpack.c.h.b16 %v707
      %v905 = vunpack.c.l.b16 %v708
      %v906 = vunpack.c.h.b16 %v708
      %v907 = vunpack.c.l.b16 %v709
      %v908 = vunpack.c.h.b16 %v709
      %v909 = vunpack.c.l.b16 %v710
      %v910 = vunpack.c.h.b16 %v710
      %v911 = vunpack.c.l.b16 %v711
      %v912 = vunpack.c.h.b16 %v711
      %v913 = vunpack.c.l.b16 %v712
      %v914 = vunpack.c.h.b16 %v712
      %v915 = vunpack.c.l.b16 %v713
      %v916 = vunpack.c.h.b16 %v713
      %v917 = vunpack.c.l.b16 %v714
      %v918 = vunpack.c.h.b16 %v714
      %v919 = vpack.c.b16 %v793, %v791
      %v920 = vpack.c.b16 %v794, %v792
      %v921 = vpack.c.b16 %v797, %v795
      %v922 = vpack.c.b16 %v798, %v796
      %v923 = vpack.c.b16 %v801, %v799
      %v924 = vpack.c.b16 %v802, %v800
      %v925 = vpack.c.b16 %v805, %v803
      %v926 = vpack.c.b16 %v806, %v804
      %v927 = vpack.c.b16 %v809, %v807
      %v928 = vpack.c.b16 %v810, %v808
      %v929 = vpack.c.b16 %v813, %v811
      %v930 = vpack.c.b16 %v814, %v812
      %v931 = vpack.c.b16 %v817, %v815
      %v932 = vpack.c.b16 %v818, %v816
      %v933 = vpack.c.b16 %v821, %v819
      %v934 = vpack.c.b16 %v822, %v820
      %v935 = vpack.c.b16 %v825, %v823
      %v936 = vpack.c.b16 %v826, %v824
      %v937 = vpack.c.b16 %v829, %v827
      %v938 = vpack.c.b16 %v830, %v828
      %v939 = vpack.c.b16 %v833, %v831
      %v940 = vpack.c.b16 %v834, %v832
      %v941 = vpack.c.b16 %v837, %v835
      %v942 = vpack.c.b16 %v838, %v836
      %v943 = vpack.c.b16 %v841, %v839
      %v944 = vpack.c.b16 %v842, %v840
      %v945 = vpack.c.b16 %v845, %v843
      %v946 = vpack.c.b16 %v846, %v844
      %v947 = vpack.c.b16 %v849, %v847
      %v948 = vpack.c.b16 %v850, %v848
      %v949 = vpack.c.b16 %v853, %v851
      %v950 = vpack.c.b16 %v854, %v852
      %v951 = vpack.c.b16 %v857, %v855
      %v952 = vpack.c.b16 %v858, %v856
      %v953 = vpack.c.b16 %v861, %v859
      %v954 = vpack.c.b16 %v862, %v860
      %v955 = vpack.c.b16 %v865, %v863
      %v956 = vpack.c.b16 %v866, %v864
      %v957 = vpack.c.b16 %v869, %v867
      %v958 = vpack.c.b16 %v870, %v868
      %v959 = vpack.c.b16 %v873, %v871
      %v960 = vpack.c.b16 %v874, %v872
      %v961 = vpack.c.b16 %v877, %v875
      %v962 = vpack.c.b16 %v878, %v876
      %v963 = vpack.c.b16 %v881, %v879
      %v964 = vpack.c.b16 %v882, %v880
      %v965 = vpack.c.b16 %v885, %v883
      %v966 = vpack.c.b16 %v886, %v884
      %v967 = vpack.c.b16 %v889, %v887
      %v968 = vpack.c.b16 %v890, %v888
      %v969 = vpack.c.b16 %v893, %v891
      %v970 = vpack.c.b16 %v894, %v892
      %v971 = vpack.c.b16 %v897, %v895
      %v972 = vpack.c.b16 %v898, %v896
      %v973 = vpack.c.b16 %v901, %v899
      %v974 = vpack.c.b16 %v902, %v900
      %v975 = vpack.c.b16 %v905, %v903
      %v976 = vpack.c.b16 %v906, %v904
      %v977 = vpack.c.b16 %v909, %v907
      %v978 = vpack.c.b16 %v910, %v908
      %v979 = vpack.c.b16 %v913, %v911
      %v980 = vpack.c.b16 %v914, %v912
      %v981 = vpack.c.b16 %v917, %v915
      %v982 = vpack.c.b16 %v918, %v916
      %1047 = vmatprep.subr.bf16.mxu0 %v920
      %1048 = vmatpush1.bf16.msra.mxu0 %v919
      %1049 = vmatprep.subr.bf16.mxu0 %v922
      %1050 = vmatpush1.bf16.msra.mxu0 %v921
      %1051 = vmatprep.subr.bf16.mxu0 %v924
      %1052 = vmatpush1.bf16.msra.mxu0 %v923
      %1053 = vmatprep.subr.bf16.mxu0 %v926
      %1054 = vmatpush1.bf16.msra.mxu0 %v925
      %1055 = vmatprep.subr.bf16.mxu0 %v928
      %1056 = vmatpush1.bf16.msra.mxu0 %v927
      %1057 = vmatprep.subr.bf16.mxu0 %v930
      %1058 = vmatpush1.bf16.msra.mxu0 %v929
      %1059 = vmatprep.subr.bf16.mxu0 %v932
      %1060 = vmatpush1.bf16.msra.mxu0 %v931
      %1061 = vmatprep.subr.bf16.mxu0 %v934
      %1062 = vmatpush1.bf16.msra.mxu0 %v933
      %1063 = vmatprep.subr.bf16.mxu0 %v936
      %1064 = vmatpush1.bf16.msra.mxu0 %v935
      %1065 = vmatprep.subr.bf16.mxu0 %v938
      %1066 = vmatpush1.bf16.msra.mxu0 %v937
      %1067 = vmatprep.subr.bf16.mxu0 %v940
      %1068 = vmatpush1.bf16.msra.mxu0 %v939
      %1069 = vmatprep.subr.bf16.mxu0 %v942
      %1070 = vmatpush1.bf16.msra.mxu0 %v941
      %1071 = vmatprep.subr.bf16.mxu0 %v944
      %1072 = vmatpush1.bf16.msra.mxu0 %v943
      %1073 = vmatprep.subr.bf16.mxu0 %v946
      %1074 = vmatpush1.bf16.msra.mxu0 %v945
      %1075 = vmatprep.subr.bf16.mxu0 %v948
      %1076 = vmatpush1.bf16.msra.mxu0 %v947
      %1077 = vmatprep.subr.bf16.mxu0 %v950
      %1078 = vmatpush1.bf16.msra.mxu0 %v949
      %1079 = vmatprep.mubr.bf16.mxu0 %v625
      %1080 = vmatmul.mubr.bf16.gmra.mrb[0].mxu0 %v593
      %v1081 = vpop.f32.mrb[0].mxu0
      %v1082 = vadd.f32 %v720, %v1081
      %v1083 = vpop.f32.mrb[0].mxu0
      %v1084 = vadd.f32 %v724, %v1083
      %v1085 = vpop.f32.mrb[0].mxu0
      %v1086 = vadd.f32 %v720, %v1085
      %v1087 = vpop.f32.mrb[0].mxu0
      %v1088 = vadd.f32 %v724, %v1087
      %1089 = vmatprep.mubr.bf16.mxu0 %v626
      %1090 = vmatmul.mubr.bf16.gmra.mrb[0].mxu0 %v594
      %v1091 = vpop.f32.mrb[0].mxu0
      %v1092 = vadd.f32 %v720, %v1091
      %v1093 = vpop.f32.mrb[0].mxu0
      %v1094 = vadd.f32 %v724, %v1093
      %v1095 = vpop.f32.mrb[0].mxu0
      %v1096 = vadd.f32 %v720, %v1095
      %v1097 = vpop.f32.mrb[0].mxu0
      %v1098 = vadd.f32 %v724, %v1097
      %1099 = vmatprep.mubr.bf16.mxu0 %v627
      %1100 = vmatmul.mubr.bf16.gmra.mrb[0].mxu0 %v595
      %v1101 = vpop.f32.mrb[0].mxu0
      %v1102 = vadd.f32 %v720, %v1101
      %v1103 = vpop.f32.mrb[0].mxu0
      %v1104 = vadd.f32 %v724, %v1103
      %v1105 = vpop.f32.mrb[0].mxu0
      %v1106 = vadd.f32 %v720, %v1105
      %v1107 = vpop.f32.mrb[0].mxu0
      %v1108 = vadd.f32 %v724, %v1107
      %1109 = vmatprep.mubr.bf16.mxu0 %v628
      %1110 = vmatmul.mubr.bf16.gmra.mrb[0].mxu0 %v596
      %v1111 = vpop.f32.mrb[0].mxu0
      %v1112 = vadd.f32 %v720, %v1111
      %v1113 = vpop.f32.mrb[0].mxu0
      %v1114 = vadd.f32 %v724, %v1113
      %v1115 = vpop.f32.mrb[0].mxu0
      %v1116 = vadd.f32 %v720, %v1115
      %v1117 = vpop.f32.mrb[0].mxu0
      %v1118 = vadd.f32 %v724, %v1117
      %1119 = vmatprep.mubr.bf16.mxu0 %v629
      %1120 = vmatmul.mubr.bf16.gmra.mrb[0].mxu0 %v597
      %v1121 = vpop.f32.mrb[0].mxu0
      %v1122 = vadd.f32 %v720, %v1121
      %v1123 = vpop.f32.mrb[0].mxu0
      %v1124 = vadd.f32 %v724, %v1123
      %v1125 = vpop.f32.mrb[0].mxu0
      %v1126 = vadd.f32 %v720, %v1125
      %v1127 = vpop.f32.mrb[0].mxu0
      %v1128 = vadd.f32 %v724, %v1127
      %1129 = vmatprep.mubr.bf16.mxu0 %v630
      %1130 = vmatmul.mubr.bf16.gmra.mrb[0].mxu0 %v598
      %v1131 = vpop.f32.mrb[0].mxu0
      %v1132 = vadd.f32 %v720, %v1131
      %v1133 = vpop.f32.mrb[0].mxu0
      %v1134 = vadd.f32 %v724, %v1133
      %v1135 = vpop.f32.mrb[0].mxu0
      %v1136 = vadd.f32 %v720, %v1135
      %v1137 = vpop.f32.mrb[0].mxu0
      %v1138 = vadd.f32 %v724, %v1137
      %1139 = vmatprep.mubr.bf16.mxu0 %v631
      %1140 = vmatmul.mubr.bf16.gmra.mrb[0].mxu0 %v599
      %v1141 = vpop.f32.mrb[0].mxu0
      %v1142 = vadd.f32 %v720, %v1141
      %v1143 = vpop.f32.mrb[0].mxu0
      %v1144 = vadd.f32 %v724, %v1143
      %v1145 = vpop.f32.mrb[0].mxu0
      %v1146 = vadd.f32 %v720, %v1145
      %v1147 = vpop.f32.mrb[0].mxu0
      %v1148 = vadd.f32 %v724, %v1147
      %1149 = vmatprep.mubr.bf16.mxu0 %v632
      %1150 = vmatmul.mubr.bf16.gmra.mrb[0].mxu0 %v600
      %v1151 = vpop.f32.mrb[0].mxu0
      %v1152 = vadd.f32 %v720, %v1151
      %v1153 = vpop.f32.mrb[0].mxu0
      %v1154 = vadd.f32 %v724, %v1153
      %v1155 = vpop.f32.mrb[0].mxu0
      %v1156 = vadd.f32 %v720, %v1155
      %v1157 = vpop.f32.mrb[0].mxu0
      %v1158 = vadd.f32 %v724, %v1157
      %1159 = vdwg.mxu0
      %1160 = vmatprep.subr.bf16.mxu0 %v952
      %1161 = vmatpush1.bf16.msra.mxu0 %v951
      %1162 = vmatprep.subr.bf16.mxu0 %v954
      %1163 = vmatpush1.bf16.msra.mxu0 %v953
      %1164 = vmatprep.subr.bf16.mxu0 %v956
      %1165 = vmatpush1.bf16.msra.mxu0 %v955
      %1166 = vmatprep.subr.bf16.mxu0 %v958
      %1167 = vmatpush1.bf16.msra.mxu0 %v957
      %1168 = vmatprep.subr.bf16.mxu0 %v960
      %1169 = vmatpush1.bf16.msra.mxu0 %v959
      %1170 = vmatprep.subr.bf16.mxu0 %v962
      %1171 = vmatpush1.bf16.msra.mxu0 %v961
      %1172 = vmatprep.subr.bf16.mxu0 %v964
      %1173 = vmatpush1.bf16.msra.mxu0 %v963
      %1174 = vmatprep.subr.bf16.mxu0 %v966
      %1175 = vmatpush1.bf16.msra.mxu0 %v965
      %1176 = vmatprep.subr.bf16.mxu0 %v968
      %1177 = vmatpush1.bf16.msra.mxu0 %v967
      %1178 = vmatprep.subr.bf16.mxu0 %v970
      %1179 = vmatpush1.bf16.msra.mxu0 %v969
      %1180 = vmatprep.subr.bf16.mxu0 %v972
      %1181 = vmatpush1.bf16.msra.mxu0 %v971
      %1182 = vmatprep.subr.bf16.mxu0 %v974
      %1183 = vmatpush1.bf16.msra.mxu0 %v973
      %1184 = vmatprep.subr.bf16.mxu0 %v976
      %1185 = vmatpush1.bf16.msra.mxu0 %v975
      %1186 = vmatprep.subr.bf16.mxu0 %v978
      %1187 = vmatpush1.bf16.msra.mxu0 %v977
      %1188 = vmatprep.subr.bf16.mxu0 %v980
      %1189 = vmatpush1.bf16.msra.mxu0 %v979
      %1190 = vmatprep.subr.bf16.mxu0 %v982
      %1191 = vmatpush1.bf16.msra.mxu0 %v981
      %1192 = vmatprep.mubr.bf16.mxu0 %v626
      %1193 = vmatmul.mubr.bf16.gmra.mrb[0].mxu0 %v594
      %v1194 = vpop.f32.mrb[0].mxu0
      %v1195 = vadd.f32 %v1082, %v1194
      %v1196 = vpop.f32.mrb[0].mxu0
      %v1197 = vadd.f32 %v1084, %v1196
      %v1198 = vpop.f32.mrb[0].mxu0
      %v1199 = vadd.f32 %v1086, %v1198
      %v1200 = vpop.f32.mrb[0].mxu0
      %v1201 = vadd.f32 %v1088, %v1200
      %1202 = vmatprep.mubr.bf16.mxu0 %v627
      %1203 = vmatmul.mubr.bf16.gmra.mrb[0].mxu0 %v595
      %v1204 = vpop.f32.mrb[0].mxu0
      %v1205 = vadd.f32 %v1092, %v1204
      %v1206 = vpop.f32.mrb[0].mxu0
      %v1207 = vadd.f32 %v1094, %v1206
      %v1208 = vpop.f32.mrb[0].mxu0
      %v1209 = vadd.f32 %v1096, %v1208
      %v1210 = vpop.f32.mrb[0].mxu0
      %v1211 = vadd.f32 %v1098, %v1210
      %1212 = vmatprep.mubr.bf16.mxu0 %v628
      %1213 = vmatmul.mubr.bf16.gmra.mrb[0].mxu0 %v596
      %v1214 = vpop.f32.mrb[0].mxu0
      %v1215 = vadd.f32 %v1102, %v1214
      %v1216 = vpop.f32.mrb[0].mxu0
      %v1217 = vadd.f32 %v1104, %v1216
      %v1218 = vpop.f32.mrb[0].mxu0
      %v1219 = vadd.f32 %v1106, %v1218
      %v1220 = vpop.f32.mrb[0].mxu0
      %v1221 = vadd.f32 %v1108, %v1220
      %1222 = vmatprep.mubr.bf16.mxu0 %v629
      %1223 = vmatmul.mubr.bf16.gmra.mrb[0].mxu0 %v597
      %v1224 = vpop.f32.mrb[0].mxu0
      %v1225 = vadd.f32 %v1112, %v1224
      %v1226 = vpop.f32.mrb[0].mxu0
      %v1227 = vadd.f32 %v1114, %v1226
      %v1228 = vpop.f32.mrb[0].mxu0
      %v1229 = vadd.f32 %v1116, %v1228
      %v1230 = vpop.f32.mrb[0].mxu0
      %v1231 = vadd.f32 %v1118, %v1230
      %1232 = vmatprep.mubr.bf16.mxu0 %v630
      %1233 = vmatmul.mubr.bf16.gmra.mrb[0].mxu0 %v598
      %v1234 = vpop.f32.mrb[0].mxu0
      %v1235 = vadd.f32 %v1122, %v1234
      %v1236 = vpop.f32.mrb[0].mxu0
      %v1237 = vadd.f32 %v1124, %v1236
      %v1238 = vpop.f32.mrb[0].mxu0
      %v1239 = vadd.f32 %v1126, %v1238
      %v1240 = vpop.f32.mrb[0].mxu0
      %v1241 = vadd.f32 %v1128, %v1240
      %1242 = vmatprep.mubr.bf16.mxu0 %v631
      %1243 = vmatmul.mubr.bf16.gmra.mrb[0].mxu0 %v599
      %v1244 = vpop.f32.mrb[0].mxu0
      %v1245 = vadd.f32 %v1132, %v1244
      %v1246 = vpop.f32.mrb[0].mxu0
      %v1247 = vadd.f32 %v1134, %v1246
      %v1248 = vpop.f32.mrb[0].mxu0
      %v1249 = vadd.f32 %v1136, %v1248
      %v1250 = vpop.f32.mrb[0].mxu0
      %v1251 = vadd.f32 %v1138, %v1250
      %1252 = vmatprep.mubr.bf16.mxu0 %v632
      %1253 = vmatmul.mubr.bf16.gmra.mrb[0].mxu0 %v600
      %v1254 = vpop.f32.mrb[0].mxu0
      %v1255 = vadd.f32 %v1142, %v1254
      %v1256 = vpop.f32.mrb[0].mxu0
      %v1257 = vadd.f32 %v1144, %v1256
      %v1258 = vpop.f32.mrb[0].mxu0
      %v1259 = vadd.f32 %v1146, %v1258
      %v1260 = vpop.f32.mrb[0].mxu0
      %v1261 = vadd.f32 %v1148, %v1260
      %1262 = vmatprep.mubr.bf16.mxu0 %v649
      %1263 = vmatmul.mubr.bf16.gmra.mrb[0].mxu0 %v645
      %v1264 = vpop.f32.mrb[0].mxu0
      %v1265 = vadd.f32 %v1152, %v1264
      %v1266 = vpop.f32.mrb[0].mxu0
      %v1267 = vadd.f32 %v1154, %v1266
      %v1268 = vpop.f32.mrb[0].mxu0
      %v1269 = vadd.f32 %v1156, %v1268
      %v1270 = vpop.f32.mrb[0].mxu0
      %v1271 = vadd.f32 %v1158, %v1270
      %1272 = vdwg.mxu0
      %v1273 = vmax.f32 %v1195, 0.0
      %v1274 = vmax.f32 %v1197, 0.0
      %v1275 = vmax.f32 %v1199, 0.0
      %v1276 = vmax.f32 %v1201, 0.0
      %v1277 = vmax.f32 %v1205, 0.0
      %v1278 = vmax.f32 %v1207, 0.0
      %v1279 = vmax.f32 %v1209, 0.0
      %v1280 = vmax.f32 %v1211, 0.0
      %v1281 = vmax.f32 %v1215, 0.0
      %v1282 = vmax.f32 %v1217, 0.0
      %v1283 = vmax.f32 %v1219, 0.0
      %v1284 = vmax.f32 %v1221, 0.0
      %v1285 = vmax.f32 %v1225, 0.0
      %v1286 = vmax.f32 %v1227, 0.0
      %v1287 = vmax.f32 %v1229, 0.0
      %v1288 = vmax.f32 %v1231, 0.0
      %v1289 = vmax.f32 %v1235, 0.0
      %v1290 = vmax.f32 %v1237, 0.0
      %v1291 = vmax.f32 %v1239, 0.0
      %v1292 = vmax.f32 %v1241, 0.0
      %v1293 = vmax.f32 %v1245, 0.0
      %v1294 = vmax.f32 %v1247, 0.0
      %v1295 = vmax.f32 %v1249, 0.0
      %v1296 = vmax.f32 %v1251, 0.0
      %v1297 = vmax.f32 %v1255, 0.0
      %v1298 = vmax.f32 %v1257, 0.0
      %v1299 = vmax.f32 %v1259, 0.0
      %v1300 = vmax.f32 %v1261, 0.0
      %v1301 = vmax.f32 %v1265, 0.0
      %v1302 = vmax.f32 %v1267, 0.0
      %v1303 = vmax.f32 %v1269, 0.0
      %v1304 = vmax.f32 %v1271, 0.0
      %1305 = vst [vmem:[%s313] sm:$0xff] %v1273
      %1306 = vst [vmem:[%s313 + $0x8] sm:$0xff] %v1274
      %1307 = vst [vmem:[%s313 + $0x10] sm:$0xff] %v1275
      %1308 = vst [vmem:[%s313 + $0x18] sm:$0xff] %v1276
      %1309 = vst [vmem:[%s313 + $0x20] sm:$0xff] %v1277
      %1310 = vst [vmem:[%s313 + $0x28] sm:$0xff] %v1278
      %1311 = vst [vmem:[%s313 + $0x30] sm:$0xff] %v1279
      %1312 = vst [vmem:[%s313 + $0x38] sm:$0xff] %v1280
      %1313 = vst [vmem:[%s313 + $0x40] sm:$0xff] %v1281
      %1314 = vst [vmem:[%s313 + $0x48] sm:$0xff] %v1282
      %1315 = vst [vmem:[%s313 + $0x50] sm:$0xff] %v1283
      %1316 = vst [vmem:[%s313 + $0x58] sm:$0xff] %v1284
      %1317 = vst [vmem:[%s313 + $0x60] sm:$0xff] %v1285
      %1318 = vst [vmem:[%s313 + $0x68] sm:$0xff] %v1286
      %1319 = vst [vmem:[%s313 + $0x70] sm:$0xff] %v1287
      %1320 = vst [vmem:[%s313 + $0x78] sm:$0xff] %v1288
      %1321 = vst [vmem:[%s313 + $0x80] sm:$0xff] %v1289
      %1322 = vst [vmem:[%s313 + $0x88] sm:$0xff] %v1290
      %1323 = vst [vmem:[%s313 + $0x90] sm:$0xff] %v1291
      %1324 = vst [vmem:[%s313 + $0x98] sm:$0xff] %v1292
      %1325 = vst [vmem:[%s313 + $0xa0] sm:$0xff] %v1293
      %1326 = vst [vmem:[%s313 + $0xa8] sm:$0xff] %v1294
      %1327 = vst [vmem:[%s313 + $0xb0] sm:$0xff] %v1295
      %1328 = vst [vmem:[%s313 + $0xb8] sm:$0xff] %v1296
      %1329 = vst [vmem:[%s313 + $0xc0] sm:$0xff] %v1297
      %1330 = vst [vmem:[%s313 + $0xc8] sm:$0xff] %v1298
      %1331 = vst [vmem:[%s313 + $0xd0] sm:$0xff] %v1299
      %1332 = vst [vmem:[%s313 + $0xd8] sm:$0xff] %v1300
      %1333 = vst [vmem:[%s313 + $0xe0] sm:$0xff] %v1301
      %1334 = vst [vmem:[%s313 + $0xe8] sm:$0xff] %v1302
      %1335 = vst [vmem:[%s313 + $0xf0] sm:$0xff] %v1303
      %1336 = vst [vmem:[%s313 + $0xf8] sm:$0xff] %v1304
      %s1337 = smul.u32 16, %s20
      %p1338 = scmp.lt.s32.totalorder %s19, 1
      %s1339 = scalar_select %p1338, %s19, 1
      %p1340 = scmp.lt.s32.totalorder %s1337, 31
      %s1341 = scalar_select %p1340, %s1337, 31
      %s1342 = smul.addr %s1341, 2
      %s1343 = smul.addr %s1339, 64
      %s1344 = sadd.s32 %s1342, %s1343
      %s1345 = smul.addr %s1344, 8
      %s1346 = scalar_lea.vmem %s4, %s1345
      // Predicated region
      $region37: #{upsampler_block_forward.1} parent=35 // pred_check
        %p1347 = pneg %p149
      $region38: #{upsampler_block_forward.1} parent=35 // pred_check_branch
        %1349 = sbr.rel (%p1347) target = $region40
      $region39: #{upsampler_block_forward.1} parent=35 // pred_region
        %s1350 = smul.u32 16, %s20
      $region40: #{upsampler_block_forward.1} parent=35 // pred_fallthru
        _
    $region36: #{upsampler_block_forward.1} parent=5 // pred_fallthru
      _
    %p1351 = scmp.le.s32.totalorder 2, %s10
    // Predicated region
    $region41: #{upsampler_block_forward.1} parent=5 // pred_check
      %p1352 = pneg %p1351
    $region42: #{upsampler_block_forward.1} parent=5 // pred_check_branch
      %1354 = sbr.rel (%p1352) target = $region44
    $region43: #{upsampler_block_forward.1} parent=5 // pred_region
      %s1355 = ssub.s32 %s10, 2
      // Predicated region
      $region45: #{upsampler_block_forward.1} parent=43 // pred_check
        %p1356 = pneg %p155
      $region46: #{upsampler_block_forward.1} parent=43 // pred_check_branch
        %1358 = sbr.rel (%p1356) target = $region48
      $region47: #{upsampler_block_forward.1} parent=43 // pred_region
        %s1359 = smul.u32 16, %s22
        %p1360 = scmp.lt.s32.totalorder %s21, 1
        %s1361 = scalar_select %p1360, %s21, 1
        %p1362 = scmp.lt.s32.totalorder %s1359, 31
        %s1363 = scalar_select %p1362, %s1359, 31
        %s1364 = smul.addr %s1363, 2
        %s1365 = smul.addr %s1361, 64
        %s1366 = sadd.s32 %s1364, %s1365
        %s1367 = smul.addr %s1366, 8
        %s1368 = scalar_lea.vmem %s4, %s1367
      $region48: #{upsampler_block_forward.1} parent=43 // pred_fallthru
        _
    $region44: #{upsampler_block_forward.1} parent=5 // pred_fallthru
      _
  $region6: #{upsampler_block_forward.1} parent=0 // loop_footer
    %s14 = sadd.s32 1, %s10
  $region7: #{upsampler_block_forward.1} parent=0 // loop_footer_branch
    %9 = sbr.rel target = $region3
  $region8: #{upsampler_block_forward.1} parent=0 // loop_exit
    _

</llo_original>
